<compile_context>
chip_gen: v6e
topology: v6e:2x2x1
jax: 0.10.0
libtpu: 0.0.40
codegen_flags: <defaults>
</compile_context>

<pallas_src>
import functools

import jax
import jax.numpy as jnp
from jax import lax
from jax.experimental import pallas as pl
from jax.experimental.pallas import tpu as pltpu


# ----------------------------------------------------------------------------
# Pallas kernel: in-kernel channel fusion + SAME padding, single K=72 dot,
# in-kernel junk-column removal (dense lane-major NCHW output).
# ----------------------------------------------------------------------------
def _resizeback_kernel(high_ref, mid_ref, w_ref, b_ref, o_ref, xf_ref, xp_ref,
                       *, k, H, W, Wp, bb):
    # high_ref : (bb, C_in, Hp*Wp)        f32   flattened high image(s)
    # mid_ref  : (bb, C_in, H*W)          f32   flattened middle image(s)
    # w_ref    : (C_out, k*k*2*C_in)      bf16  packed weights (0.5 folded in)
    # b_ref    : (C_out, 1)               f32   combined bias 0.5*(b_high+b_mid)
    # o_ref    : (bb, C_out, H*W)         f32   dense flattened output
    # xf_ref   : (2*C_in, n_flat_pad)     f32   fused flat image scratch
    # xp_ref   : (k*k*2*C_in, H*Wp)       f32   packed-tap RHS scratch
    c_in = mid_ref.shape[1]
    c2 = 2 * c_in
    pad = (k - 1) // 2
    n_high = high_ref.shape[2]            # Hp*Wp
    m_out = H * Wp                        # flattened output rows, stride Wp
    bias = b_ref[...]                     # (C_out, 1)

    # Zero the fused-image scratch once per grid step.  The zero border of the
    # SAME-padded middle (and the tail past Hp*Wp) stays valid for every batch
    # handled by this step because later writes only touch the same interiors.
    xf_ref[...] = jnp.zeros_like(xf_ref)

    for bi in range(bb):
        # ---- build fused flat image in VMEM (no HBM pad/concat pass) ------
        # rows [0, C_in)  : the high image (row stride Wp already).
        xf_ref[:c_in, :n_high] = high_ref[bi]
        # rows [C_in, 2C) : the SAME zero-padded middle image: H row copies
        #                   into the zeroed scratch at row stride Wp.
        for h in range(H):
            dst = (h + pad) * Wp + pad
            xf_ref[c_in:c2, dst:dst + W] = mid_ref[bi, :, h * W:(h + 1) * W]

        # ---- pack the k*k shifted taps into one (k*k*2C, m_out) RHS -------
        # Each copy is sublane-tile aligned (rows t*2C); lane offsets are the
        # static tap shifts ki*Wp + kj.
        for ki in range(k):
            for kj in range(k):
                t = ki * k + kj
                s = ki * Wp + kj
                xp_ref[t * c2:(t + 1) * c2, :] = xf_ref[:, s:s + m_out]

        # ---- single K = k*k*2C matmul on the MXU, f32 accumulation --------
        acc = jnp.dot(w_ref[...], xp_ref[...].astype(jnp.bfloat16),
                      preferred_element_type=jnp.float32) + bias

        # ---- de-junk in-kernel: store only the W valid columns per row ----
        # (output stays dense channel-major NCHW -> wrapper reshape is free).
        for h in range(H):
            o_ref[bi, :, h * W:(h + 1) * W] = acc[:, h * Wp:h * Wp + W]


@functools.partial(jax.jit, static_argnames=("k",))
def conv_resizeback_forward(high_enc_out, middle_enc_out,
                            w_high, b_high, w_mid, b_mid, *, k=3):
    """high_enc_out: (B, C_in, H+k-1, W+k-1), middle_enc_out: (B, C_in, H, W).
    Returns (B, C_out, H, W) float32."""
    B, C_in, H, W = middle_enc_out.shape
    C_out = w_high.shape[0]
    Hp, Wp = H + k - 1, W + k - 1
    assert high_enc_out.shape == (B, C_in, Hp, Wp)

    C2 = 2 * C_in
    n_high = Hp * Wp
    m_out = H * Wp
    K_fused = k * k * C2

    # Free bitcasts only (contiguous trailing dims) -- no data pass.
    high_flat = high_enc_out.reshape(B, C_in, n_high)
    mid_flat = middle_enc_out.reshape(B, C_in, H * W)

    # Tiny weight prep (k*k*2C*C_out elements): fold the /2 into the weights
    # BEFORE the bf16 cast (exact for normal floats), one (C_out, 72) matrix.
    w_comb = jnp.concatenate([w_high, w_mid], axis=1)            # (C_out, 2C, k, k)
    w_pack = ((0.5 * w_comb).transpose(0, 2, 3, 1)
              .reshape(C_out, K_fused).astype(jnp.bfloat16))
    b_comb = (0.5 * (b_high + b_mid)).astype(jnp.float32).reshape(C_out, 1)

    # Batch blocking: keep >= 2 grid steps whenever B >= 2 (uses both v7x
    # TensorCores via "parallel"); fold batches together for larger B to
    # amortize fixed per-grid-step overhead.
    bb = B // 2 if (B >= 2 and B % 2 == 0) else 1
    n_steps = B // bb

    # Fused-image scratch width: tap reads go up to (m_out-1) + (k-1)*(Wp+1).
    n_flat = max(n_high, m_out + (k - 1) * (Wp + 1))
    n_flat_pad = pl.cdiv(n_flat, 128) * 128

    kern = functools.partial(_resizeback_kernel, k=k, H=H, W=W, Wp=Wp, bb=bb)
    out_flat = pl.pallas_call(
        kern,
        out_shape=jax.ShapeDtypeStruct((B, C_out, H * W), jnp.float32),
        grid_spec=pltpu.PrefetchScalarGridSpec(
            num_scalar_prefetch=0,
            grid=(n_steps,),
            in_specs=[
                pl.BlockSpec((bb, C_in, n_high), lambda b: (b, 0, 0)),   # high  (f32)
                pl.BlockSpec((bb, C_in, H * W), lambda b: (b, 0, 0)),    # middle(f32)
                pl.BlockSpec((C_out, K_fused), lambda b: (0, 0)),        # weights
                pl.BlockSpec((C_out, 1), lambda b: (0, 0)),              # bias
            ],
            out_specs=pl.BlockSpec((bb, C_out, H * W), lambda b: (b, 0, 0)),
            scratch_shapes=[
                pltpu.VMEM((C2, n_flat_pad), jnp.float32),   # fused flat image
                pltpu.VMEM((K_fused, m_out), jnp.float32),   # packed-tap RHS
            ],
        ),
        compiler_params=pltpu.CompilerParams(
            dimension_semantics=("parallel",)),
    )(high_flat, mid_flat, w_pack, b_comb)

    # Already dense channel-major NCHW; this reshape is a free bitcast.
    return out_flat.reshape(B, C_out, H, W)


# ----------------------------------------------------------------------------
# Pure-JAX reference (lax conv, true f32) for correctness check
# ----------------------------------------------------------------------------
def _reference(high, middle, w_high, b_high, w_mid, b_mid):
    dn = lax.conv_dimension_numbers(high.shape, w_high.shape,
                                    ("NCHW", "OIHW", "NCHW"))
    x_high = lax.conv_general_dilated(high, w_high, (1, 1), "VALID",
                                      dimension_numbers=dn,
                                      precision=lax.Precision.HIGHEST)
    x_high = x_high + b_high[None, :, None, None]
    x_mid = lax.conv_general_dilated(middle, w_mid, (1, 1), "SAME",
                                     dimension_numbers=dn,
                                     precision=lax.Precision.HIGHEST)
    x_mid = x_mid + b_mid[None, :, None, None]
    return (x_high + x_mid) / 2


if __name__ == "__main__":
    key = jax.random.PRNGKey(0)
    B, C_in, C_out, H, W = 2, 4, 4, 16, 16
    k = 3

    k1, k2, k3, k4, k5, k6 = jax.random.split(key, 6)
    # middle is (B, C, H, W); high is (B, C, H+2, W+2) so the unpadded conv
    # "resizes back" to (H, W).
    middle_enc_out = jax.random.normal(k1, (B, C_in, H, W), jnp.float32)
    high_enc_out = jax.random.normal(k2, (B, C_in, H + k - 1, W + k - 1),
                                     jnp.float32)

    # Kaiming-normal (fan_out, relu) init; small non-zero biases to exercise
    # the bias path (the module's init sets them to 0, but they are free params).
    fan_out = C_out * k * k
    std = (2.0 / fan_out) ** 0.5
    w_high = std * jax.random.normal(k3, (C_out, C_in, k, k), jnp.float32)
    w_mid = std * jax.random.normal(k4, (C_out, C_in, k, k), jnp.float32)
    b_high = 0.1 * jax.random.normal(k5, (C_out,), jnp.float32)
    b_mid = 0.1 * jax.random.normal(k6, (C_out,), jnp.float32)

    out = conv_resizeback_forward(high_enc_out, middle_enc_out,
                                  w_high, b_high, w_mid, b_mid, k=k)
    out = jax.block_until_ready(out)
    assert out.shape == (B, C_out, H, W)

    # Tight check vs a reference using the same bf16-quantized operands
    # (validates indexing / in-kernel padding / fusion / bias math exactly;
    # folding 0.5 into the weights before the bf16 cast is an exact rescale).
    bf = lambda a: a.astype(jnp.bfloat16).astype(jnp.float32)
    ref_bf16 = _reference(bf(high_enc_out), bf(middle_enc_out),
                          bf(w_high), b_high, bf(w_mid), b_mid)
    assert jnp.allclose(out, ref_bf16, atol=1e-3, rtol=1e-3), \
        "mismatch vs bf16-consistent reference"

    # Loose sanity check vs the full-f32 module semantics (bf16 operand
    # rounding on the MXU is the intended perf tradeoff -> relaxed tolerance).
    ref_f32 = _reference(high_enc_out, middle_enc_out,
                         w_high, b_high, w_mid, b_mid)
    assert jnp.allclose(out, ref_f32, atol=1e-1, rtol=1e-1), \
        "mismatch vs f32 reference"

    print("KERNEL_OK")
</pallas_src>

<mosaic_0001>
module attributes {stable_mosaic.version = 11 : i64} {
  func.func @_resizeback_kernel(%arg0: i32, %arg1: memref<1x4x324xf32, #tpu.memory_space<vmem>>, %arg2: memref<1x4x256xf32, #tpu.memory_space<vmem>>, %arg3: memref<4x72xbf16, #tpu.memory_space<vmem>>, %arg4: memref<4x1xf32, #tpu.memory_space<vmem>>, %arg5: memref<1x4x256xf32, #tpu.memory_space<vmem>>, %arg6: memref<8x384xf32, #tpu.memory_space<vmem>>, %arg7: memref<72x288xf32, #tpu.memory_space<vmem>>) attributes {dimension_semantics = [#tpu.dimension_semantics<parallel>], iteration_bounds = array<i64: 2>, scalar_prefetch = 0 : i64, scratch_operands = 2 : i64, tpu.core_type = #tpu.core_type<tc>, window_params = [{transform_indices = @transform_0, window_bounds = array<i64: 1, 4, 324>}, {transform_indices = @transform_1, window_bounds = array<i64: 1, 4, 256>}, {pipeline_mode = #tpu.pipeline_mode<synchronous>, transform_indices = @transform_2, window_bounds = array<i64: 4, 72>}, {pipeline_mode = #tpu.pipeline_mode<synchronous>, transform_indices = @transform_3, window_bounds = array<i64: 4, 1>}, {transform_indices = @transform_4, window_bounds = array<i64: 1, 4, 256>}]} {
    %c0 = arith.constant 0 : index
    %c0_0 = arith.constant 0 : index
    %0 = vector.load %arg4[%c0, %c0_0] : memref<4x1xf32, #tpu.memory_space<vmem>>, vector<4x1xf32>
    %cst = arith.constant 0.000000e+00 : f32
    %1 = vector.broadcast %cst : f32 to vector<8x384xf32>
    %c0_1 = arith.constant 0 : index
    %c0_2 = arith.constant 0 : index
    %2 = vector.load %arg6[%c0_1, %c0_2] : memref<8x384xf32, #tpu.memory_space<vmem>>, vector<8x384xf32>
    tpu.vector_store %arg6[%c0_1, %c0_2], %1 {strides = array<i32>} : memref<8x384xf32, #tpu.memory_space<vmem>>, vector<8x384xf32>,
    %c0_3 = arith.constant 0 : index
    %c0_4 = arith.constant 0 : index
    %c0_5 = arith.constant 0 : index
    %3 = vector.load %arg1[%c0_3, %c0_4, %c0_5] : memref<1x4x324xf32, #tpu.memory_space<vmem>>, vector<1x4x324xf32>
    %4 = vector.shape_cast %3 : vector<1x4x324xf32> to vector<4x324xf32>
    %c0_6 = arith.constant 0 : index
    %c0_7 = arith.constant 0 : index
    %5 = vector.load %arg6[%c0_6, %c0_7] : memref<8x384xf32, #tpu.memory_space<vmem>>, vector<4x324xf32>
    tpu.vector_store %arg6[%c0_6, %c0_7], %4 {strides = array<i32>} : memref<8x384xf32, #tpu.memory_space<vmem>>, vector<4x324xf32>,
    %c0_8 = arith.constant 0 : index
    %c0_9 = arith.constant 0 : index
    %c0_10 = arith.constant 0 : index
    %6 = vector.load %arg2[%c0_8, %c0_9, %c0_10] : memref<1x4x256xf32, #tpu.memory_space<vmem>>, vector<1x4x16xf32>
    %7 = vector.shape_cast %6 : vector<1x4x16xf32> to vector<4x16xf32>
    %c4 = arith.constant 4 : index
    %c19 = arith.constant 19 : index
    %8 = vector.load %arg6[%c4, %c19] : memref<8x384xf32, #tpu.memory_space<vmem>>, vector<4x16xf32>
    tpu.vector_store %arg6[%c4, %c19], %7 {strides = array<i32>} : memref<8x384xf32, #tpu.memory_space<vmem>>, vector<4x16xf32>,
    %c0_11 = arith.constant 0 : index
    %c0_12 = arith.constant 0 : index
    %c16 = arith.constant 16 : index
    %9 = vector.load %arg2[%c0_11, %c0_12, %c16] : memref<1x4x256xf32, #tpu.memory_space<vmem>>, vector<1x4x16xf32>
    %10 = vector.shape_cast %9 : vector<1x4x16xf32> to vector<4x16xf32>
    %c4_13 = arith.constant 4 : index
    %c37 = arith.constant 37 : index
    %11 = vector.load %arg6[%c4_13, %c37] : memref<8x384xf32, #tpu.memory_space<vmem>>, vector<4x16xf32>
    tpu.vector_store %arg6[%c4_13, %c37], %10 {strides = array<i32>} : memref<8x384xf32, #tpu.memory_space<vmem>>, vector<4x16xf32>,
    %c0_14 = arith.constant 0 : index
    %c0_15 = arith.constant 0 : index
    %c32 = arith.constant 32 : index
    %12 = vector.load %arg2[%c0_14, %c0_15, %c32] : memref<1x4x256xf32, #tpu.memory_space<vmem>>, vector<1x4x16xf32>
    %13 = vector.shape_cast %12 : vector<1x4x16xf32> to vector<4x16xf32>
    %c4_16 = arith.constant 4 : index
    %c55 = arith.constant 55 : index
    %14 = vector.load %arg6[%c4_16, %c55] : memref<8x384xf32, #tpu.memory_space<vmem>>, vector<4x16xf32>
    tpu.vector_store %arg6[%c4_16, %c55], %13 {strides = array<i32>} : memref<8x384xf32, #tpu.memory_space<vmem>>, vector<4x16xf32>,
    %c0_17 = arith.constant 0 : index
    %c0_18 = arith.constant 0 : index
    %c48 = arith.constant 48 : index
    %15 = vector.load %arg2[%c0_17, %c0_18, %c48] : memref<1x4x256xf32, #tpu.memory_space<vmem>>, vector<1x4x16xf32>
    %16 = vector.shape_cast %15 : vector<1x4x16xf32> to vector<4x16xf32>
    %c4_19 = arith.constant 4 : index
    %c73 = arith.constant 73 : index
    %17 = vector.load %arg6[%c4_19, %c73] : memref<8x384xf32, #tpu.memory_space<vmem>>, vector<4x16xf32>
    tpu.vector_store %arg6[%c4_19, %c73], %16 {strides = array<i32>} : memref<8x384xf32, #tpu.memory_space<vmem>>, vector<4x16xf32>,
    %c0_20 = arith.constant 0 : index
    %c0_21 = arith.constant 0 : index
    %c64 = arith.constant 64 : index
    %18 = vector.load %arg2[%c0_20, %c0_21, %c64] : memref<1x4x256xf32, #tpu.memory_space<vmem>>, vector<1x4x16xf32>
    %19 = vector.shape_cast %18 : vector<1x4x16xf32> to vector<4x16xf32>
    %c4_22 = arith.constant 4 : index
    %c91 = arith.constant 91 : index
    %20 = vector.load %arg6[%c4_22, %c91] : memref<8x384xf32, #tpu.memory_space<vmem>>, vector<4x16xf32>
    tpu.vector_store %arg6[%c4_22, %c91], %19 {strides = array<i32>} : memref<8x384xf32, #tpu.memory_space<vmem>>, vector<4x16xf32>,
    %c0_23 = arith.constant 0 : index
    %c0_24 = arith.constant 0 : index
    %c80 = arith.constant 80 : index
    %21 = vector.load %arg2[%c0_23, %c0_24, %c80] : memref<1x4x256xf32, #tpu.memory_space<vmem>>, vector<1x4x16xf32>
    %22 = vector.shape_cast %21 : vector<1x4x16xf32> to vector<4x16xf32>
    %c4_25 = arith.constant 4 : index
    %c109 = arith.constant 109 : index
    %23 = vector.load %arg6[%c4_25, %c109] : memref<8x384xf32, #tpu.memory_space<vmem>>, vector<4x16xf32>
    tpu.vector_store %arg6[%c4_25, %c109], %22 {strides = array<i32>} : memref<8x384xf32, #tpu.memory_space<vmem>>, vector<4x16xf32>,
    %c0_26 = arith.constant 0 : index
    %c0_27 = arith.constant 0 : index
    %c96 = arith.constant 96 : index
    %24 = vector.load %arg2[%c0_26, %c0_27, %c96] : memref<1x4x256xf32, #tpu.memory_space<vmem>>, vector<1x4x16xf32>
    %25 = vector.shape_cast %24 : vector<1x4x16xf32> to vector<4x16xf32>
    %c4_28 = arith.constant 4 : index
    %c127 = arith.constant 127 : index
    %26 = vector.load %arg6[%c4_28, %c127] : memref<8x384xf32, #tpu.memory_space<vmem>>, vector<4x16xf32>
    tpu.vector_store %arg6[%c4_28, %c127], %25 {strides = array<i32>} : memref<8x384xf32, #tpu.memory_space<vmem>>, vector<4x16xf32>,
    %c0_29 = arith.constant 0 : index
    %c0_30 = arith.constant 0 : index
    %c112 = arith.constant 112 : index
    %27 = vector.load %arg2[%c0_29, %c0_30, %c112] : memref<1x4x256xf32, #tpu.memory_space<vmem>>, vector<1x4x16xf32>
    %28 = vector.shape_cast %27 : vector<1x4x16xf32> to vector<4x16xf32>
    %c4_31 = arith.constant 4 : index
    %c145 = arith.constant 145 : index
    %29 = vector.load %arg6[%c4_31, %c145] : memref<8x384xf32, #tpu.memory_space<vmem>>, vector<4x16xf32>
    tpu.vector_store %arg6[%c4_31, %c145], %28 {strides = array<i32>} : memref<8x384xf32, #tpu.memory_space<vmem>>, vector<4x16xf32>,
    %c0_32 = arith.constant 0 : index
    %c0_33 = arith.constant 0 : index
    %c128 = arith.constant 128 : index
    %30 = vector.load %arg2[%c0_32, %c0_33, %c128] : memref<1x4x256xf32, #tpu.memory_space<vmem>>, vector<1x4x16xf32>
    %31 = vector.shape_cast %30 : vector<1x4x16xf32> to vector<4x16xf32>
    %c4_34 = arith.constant 4 : index
    %c163 = arith.constant 163 : index
    %32 = vector.load %arg6[%c4_34, %c163] : memref<8x384xf32, #tpu.memory_space<vmem>>, vector<4x16xf32>
    tpu.vector_store %arg6[%c4_34, %c163], %31 {strides = array<i32>} : memref<8x384xf32, #tpu.memory_space<vmem>>, vector<4x16xf32>,
    %c0_35 = arith.constant 0 : index
    %c0_36 = arith.constant 0 : index
    %c144 = arith.constant 144 : index
    %33 = vector.load %arg2[%c0_35, %c0_36, %c144] : memref<1x4x256xf32, #tpu.memory_space<vmem>>, vector<1x4x16xf32>
    %34 = vector.shape_cast %33 : vector<1x4x16xf32> to vector<4x16xf32>
    %c4_37 = arith.constant 4 : index
    %c181 = arith.constant 181 : index
    %35 = vector.load %arg6[%c4_37, %c181] : memref<8x384xf32, #tpu.memory_space<vmem>>, vector<4x16xf32>
    tpu.vector_store %arg6[%c4_37, %c181], %34 {strides = array<i32>} : memref<8x384xf32, #tpu.memory_space<vmem>>, vector<4x16xf32>,
    %c0_38 = arith.constant 0 : index
    %c0_39 = arith.constant 0 : index
    %c160 = arith.constant 160 : index
    %36 = vector.load %arg2[%c0_38, %c0_39, %c160] : memref<1x4x256xf32, #tpu.memory_space<vmem>>, vector<1x4x16xf32>
    %37 = vector.shape_cast %36 : vector<1x4x16xf32> to vector<4x16xf32>
    %c4_40 = arith.constant 4 : index
    %c199 = arith.constant 199 : index
    %38 = vector.load %arg6[%c4_40, %c199] : memref<8x384xf32, #tpu.memory_space<vmem>>, vector<4x16xf32>
    tpu.vector_store %arg6[%c4_40, %c199], %37 {strides = array<i32>} : memref<8x384xf32, #tpu.memory_space<vmem>>, vector<4x16xf32>,
    %c0_41 = arith.constant 0 : index
    %c0_42 = arith.constant 0 : index
    %c176 = arith.constant 176 : index
    %39 = vector.load %arg2[%c0_41, %c0_42, %c176] : memref<1x4x256xf32, #tpu.memory_space<vmem>>, vector<1x4x16xf32>
    %40 = vector.shape_cast %39 : vector<1x4x16xf32> to vector<4x16xf32>
    %c4_43 = arith.constant 4 : index
    %c217 = arith.constant 217 : index
    %41 = vector.load %arg6[%c4_43, %c217] : memref<8x384xf32, #tpu.memory_space<vmem>>, vector<4x16xf32>
    tpu.vector_store %arg6[%c4_43, %c217], %40 {strides = array<i32>} : memref<8x384xf32, #tpu.memory_space<vmem>>, vector<4x16xf32>,
    %c0_44 = arith.constant 0 : index
    %c0_45 = arith.constant 0 : index
    %c192 = arith.constant 192 : index
    %42 = vector.load %arg2[%c0_44, %c0_45, %c192] : memref<1x4x256xf32, #tpu.memory_space<vmem>>, vector<1x4x16xf32>
    %43 = vector.shape_cast %42 : vector<1x4x16xf32> to vector<4x16xf32>
    %c4_46 = arith.constant 4 : index
    %c235 = arith.constant 235 : index
    %44 = vector.load %arg6[%c4_46, %c235] : memref<8x384xf32, #tpu.memory_space<vmem>>, vector<4x16xf32>
    tpu.vector_store %arg6[%c4_46, %c235], %43 {strides = array<i32>} : memref<8x384xf32, #tpu.memory_space<vmem>>, vector<4x16xf32>,
    %c0_47 = arith.constant 0 : index
    %c0_48 = arith.constant 0 : index
    %c208 = arith.constant 208 : index
    %45 = vector.load %arg2[%c0_47, %c0_48, %c208] : memref<1x4x256xf32, #tpu.memory_space<vmem>>, vector<1x4x16xf32>
    %46 = vector.shape_cast %45 : vector<1x4x16xf32> to vector<4x16xf32>
    %c4_49 = arith.constant 4 : index
    %c253 = arith.constant 253 : index
    %47 = vector.load %arg6[%c4_49, %c253] : memref<8x384xf32, #tpu.memory_space<vmem>>, vector<4x16xf32>
    tpu.vector_store %arg6[%c4_49, %c253], %46 {strides = array<i32>} : memref<8x384xf32, #tpu.memory_space<vmem>>, vector<4x16xf32>,
    %c0_50 = arith.constant 0 : index
    %c0_51 = arith.constant 0 : index
    %c224 = arith.constant 224 : index
    %48 = vector.load %arg2[%c0_50, %c0_51, %c224] : memref<1x4x256xf32, #tpu.memory_space<vmem>>, vector<1x4x16xf32>
    %49 = vector.shape_cast %48 : vector<1x4x16xf32> to vector<4x16xf32>
    %c4_52 = arith.constant 4 : index
    %c271 = arith.constant 271 : index
    %50 = vector.load %arg6[%c4_52, %c271] : memref<8x384xf32, #tpu.memory_space<vmem>>, vector<4x16xf32>
    tpu.vector_store %arg6[%c4_52, %c271], %49 {strides = array<i32>} : memref<8x384xf32, #tpu.memory_space<vmem>>, vector<4x16xf32>,
    %c0_53 = arith.constant 0 : index
    %c0_54 = arith.constant 0 : index
    %c240 = arith.constant 240 : index
    %51 = vector.load %arg2[%c0_53, %c0_54, %c240] : memref<1x4x256xf32, #tpu.memory_space<vmem>>, vector<1x4x16xf32>
    %52 = vector.shape_cast %51 : vector<1x4x16xf32> to vector<4x16xf32>
    %c4_55 = arith.constant 4 : index
    %c289 = arith.constant 289 : index
    %53 = vector.load %arg6[%c4_55, %c289] : memref<8x384xf32, #tpu.memory_space<vmem>>, vector<4x16xf32>
    tpu.vector_store %arg6[%c4_55, %c289], %52 {strides = array<i32>} : memref<8x384xf32, #tpu.memory_space<vmem>>, vector<4x16xf32>,
    %c0_56 = arith.constant 0 : index
    %c0_57 = arith.constant 0 : index
    %54 = vector.load %arg6[%c0_56, %c0_57] : memref<8x384xf32, #tpu.memory_space<vmem>>, vector<8x288xf32>
    %c0_58 = arith.constant 0 : index
    %c0_59 = arith.constant 0 : index
    %55 = vector.load %arg7[%c0_58, %c0_59] : memref<72x288xf32, #tpu.memory_space<vmem>>, vector<8x288xf32>
    tpu.vector_store %arg7[%c0_58, %c0_59], %54 {strides = array<i32>} : memref<72x288xf32, #tpu.memory_space<vmem>>, vector<8x288xf32>,
    %c0_60 = arith.constant 0 : index
    %c1 = arith.constant 1 : index
    %56 = vector.load %arg6[%c0_60, %c1] : memref<8x384xf32, #tpu.memory_space<vmem>>, vector<8x288xf32>
    %c8 = arith.constant 8 : index
    %c0_61 = arith.constant 0 : index
    %57 = vector.load %arg7[%c8, %c0_61] : memref<72x288xf32, #tpu.memory_space<vmem>>, vector<8x288xf32>
    tpu.vector_store %arg7[%c8, %c0_61], %56 {strides = array<i32>} : memref<72x288xf32, #tpu.memory_space<vmem>>, vector<8x288xf32>,
    %c0_62 = arith.constant 0 : index
    %c2 = arith.constant 2 : index
    %58 = vector.load %arg6[%c0_62, %c2] : memref<8x384xf32, #tpu.memory_space<vmem>>, vector<8x288xf32>
    %c16_63 = arith.constant 16 : index
    %c0_64 = arith.constant 0 : index
    %59 = vector.load %arg7[%c16_63, %c0_64] : memref<72x288xf32, #tpu.memory_space<vmem>>, vector<8x288xf32>
    tpu.vector_store %arg7[%c16_63, %c0_64], %58 {strides = array<i32>} : memref<72x288xf32, #tpu.memory_space<vmem>>, vector<8x288xf32>,
    %c0_65 = arith.constant 0 : index
    %c18 = arith.constant 18 : index
    %60 = vector.load %arg6[%c0_65, %c18] : memref<8x384xf32, #tpu.memory_space<vmem>>, vector<8x288xf32>
    %c24 = arith.constant 24 : index
    %c0_66 = arith.constant 0 : index
    %61 = vector.load %arg7[%c24, %c0_66] : memref<72x288xf32, #tpu.memory_space<vmem>>, vector<8x288xf32>
    tpu.vector_store %arg7[%c24, %c0_66], %60 {strides = array<i32>} : memref<72x288xf32, #tpu.memory_space<vmem>>, vector<8x288xf32>,
    %c0_67 = arith.constant 0 : index
    %c19_68 = arith.constant 19 : index
    %62 = vector.load %arg6[%c0_67, %c19_68] : memref<8x384xf32, #tpu.memory_space<vmem>>, vector<8x288xf32>
    %c32_69 = arith.constant 32 : index
    %c0_70 = arith.constant 0 : index
    %63 = vector.load %arg7[%c32_69, %c0_70] : memref<72x288xf32, #tpu.memory_space<vmem>>, vector<8x288xf32>
    tpu.vector_store %arg7[%c32_69, %c0_70], %62 {strides = array<i32>} : memref<72x288xf32, #tpu.memory_space<vmem>>, vector<8x288xf32>,
    %c0_71 = arith.constant 0 : index
    %c20 = arith.constant 20 : index
    %64 = vector.load %arg6[%c0_71, %c20] : memref<8x384xf32, #tpu.memory_space<vmem>>, vector<8x288xf32>
    %c40 = arith.constant 40 : index
    %c0_72 = arith.constant 0 : index
    %65 = vector.load %arg7[%c40, %c0_72] : memref<72x288xf32, #tpu.memory_space<vmem>>, vector<8x288xf32>
    tpu.vector_store %arg7[%c40, %c0_72], %64 {strides = array<i32>} : memref<72x288xf32, #tpu.memory_space<vmem>>, vector<8x288xf32>,
    %c0_73 = arith.constant 0 : index
    %c36 = arith.constant 36 : index
    %66 = vector.load %arg6[%c0_73, %c36] : memref<8x384xf32, #tpu.memory_space<vmem>>, vector<8x288xf32>
    %c48_74 = arith.constant 48 : index
    %c0_75 = arith.constant 0 : index
    %67 = vector.load %arg7[%c48_74, %c0_75] : memref<72x288xf32, #tpu.memory_space<vmem>>, vector<8x288xf32>
    tpu.vector_store %arg7[%c48_74, %c0_75], %66 {strides = array<i32>} : memref<72x288xf32, #tpu.memory_space<vmem>>, vector<8x288xf32>,
    %c0_76 = arith.constant 0 : index
    %c37_77 = arith.constant 37 : index
    %68 = vector.load %arg6[%c0_76, %c37_77] : memref<8x384xf32, #tpu.memory_space<vmem>>, vector<8x288xf32>
    %c56 = arith.constant 56 : index
    %c0_78 = arith.constant 0 : index
    %69 = vector.load %arg7[%c56, %c0_78] : memref<72x288xf32, #tpu.memory_space<vmem>>, vector<8x288xf32>
    tpu.vector_store %arg7[%c56, %c0_78], %68 {strides = array<i32>} : memref<72x288xf32, #tpu.memory_space<vmem>>, vector<8x288xf32>,
    %c0_79 = arith.constant 0 : index
    %c38 = arith.constant 38 : index
    %70 = vector.load %arg6[%c0_79, %c38] : memref<8x384xf32, #tpu.memory_space<vmem>>, vector<8x288xf32>
    %c64_80 = arith.constant 64 : index
    %c0_81 = arith.constant 0 : index
    %71 = vector.load %arg7[%c64_80, %c0_81] : memref<72x288xf32, #tpu.memory_space<vmem>>, vector<8x288xf32>
    tpu.vector_store %arg7[%c64_80, %c0_81], %70 {strides = array<i32>} : memref<72x288xf32, #tpu.memory_space<vmem>>, vector<8x288xf32>,
    %c0_82 = arith.constant 0 : index
    %c0_83 = arith.constant 0 : index
    %72 = vector.load %arg3[%c0_82, %c0_83] : memref<4x72xbf16, #tpu.memory_space<vmem>>, vector<4x72xbf16>
    %c0_84 = arith.constant 0 : index
    %c0_85 = arith.constant 0 : index
    %73 = vector.load %arg7[%c0_84, %c0_85] : memref<72x288xf32, #tpu.memory_space<vmem>>, vector<72x288xf32>
    %74 = arith.truncf %73 : vector<72x288xf32> to vector<72x288xbf16>
    %cst_86 = arith.constant dense<0.000000e+00> : vector<4x288xf32>
    %75 = tpu.matmul %72, %74, %cst_86 {dimension_numbers = #tpu.dot_dimension_numbers<[1], [0], [0], [1], [0, 0, 1, 1], [], []>} : vector<4x72xbf16>, vector<72x288xbf16>, vector<4x288xf32> -> vector<4x288xf32>
    %76 = vector.broadcast %0 : vector<4x1xf32> to vector<4x288xf32>
    %77 = arith.addf %75, %76 : vector<4x288xf32>
    %78 = vector.extract_strided_slice %77 {offsets = [0, 0], sizes = [4, 16], strides = [1, 1]} : vector<4x288xf32> to vector<4x16xf32>
    %c0_87 = arith.constant 0 : index
    %c0_88 = arith.constant 0 : index
    %c0_89 = arith.constant 0 : index
    %79 = vector.load %arg5[%c0_87, %c0_88, %c0_89] : memref<1x4x256xf32, #tpu.memory_space<vmem>>, vector<1x4x16xf32>
    %80 = vector.shape_cast %79 : vector<1x4x16xf32> to vector<4x16xf32>
    %81 = vector.shape_cast %78 : vector<4x16xf32> to vector<1x4x16xf32>
    tpu.vector_store %arg5[%c0_87, %c0_88, %c0_89], %81 {strides = array<i32>} : memref<1x4x256xf32, #tpu.memory_space<vmem>>, vector<1x4x16xf32>,
    %82 = vector.extract_strided_slice %77 {offsets = [0, 18], sizes = [4, 16], strides = [1, 1]} : vector<4x288xf32> to vector<4x16xf32>
    %c0_90 = arith.constant 0 : index
    %c0_91 = arith.constant 0 : index
    %c16_92 = arith.constant 16 : index
    %83 = vector.load %arg5[%c0_90, %c0_91, %c16_92] : memref<1x4x256xf32, #tpu.memory_space<vmem>>, vector<1x4x16xf32>
    %84 = vector.shape_cast %83 : vector<1x4x16xf32> to vector<4x16xf32>
    %85 = vector.shape_cast %82 : vector<4x16xf32> to vector<1x4x16xf32>
    tpu.vector_store %arg5[%c0_90, %c0_91, %c16_92], %85 {strides = array<i32>} : memref<1x4x256xf32, #tpu.memory_space<vmem>>, vector<1x4x16xf32>,
    %86 = vector.extract_strided_slice %77 {offsets = [0, 36], sizes = [4, 16], strides = [1, 1]} : vector<4x288xf32> to vector<4x16xf32>
    %c0_93 = arith.constant 0 : index
    %c0_94 = arith.constant 0 : index
    %c32_95 = arith.constant 32 : index
    %87 = vector.load %arg5[%c0_93, %c0_94, %c32_95] : memref<1x4x256xf32, #tpu.memory_space<vmem>>, vector<1x4x16xf32>
    %88 = vector.shape_cast %87 : vector<1x4x16xf32> to vector<4x16xf32>
    %89 = vector.shape_cast %86 : vector<4x16xf32> to vector<1x4x16xf32>
    tpu.vector_store %arg5[%c0_93, %c0_94, %c32_95], %89 {strides = array<i32>} : memref<1x4x256xf32, #tpu.memory_space<vmem>>, vector<1x4x16xf32>,
    %90 = vector.extract_strided_slice %77 {offsets = [0, 54], sizes = [4, 16], strides = [1, 1]} : vector<4x288xf32> to vector<4x16xf32>
    %c0_96 = arith.constant 0 : index
    %c0_97 = arith.constant 0 : index
    %c48_98 = arith.constant 48 : index
    %91 = vector.load %arg5[%c0_96, %c0_97, %c48_98] : memref<1x4x256xf32, #tpu.memory_space<vmem>>, vector<1x4x16xf32>
    %92 = vector.shape_cast %91 : vector<1x4x16xf32> to vector<4x16xf32>
    %93 = vector.shape_cast %90 : vector<4x16xf32> to vector<1x4x16xf32>
    tpu.vector_store %arg5[%c0_96, %c0_97, %c48_98], %93 {strides = array<i32>} : memref<1x4x256xf32, #tpu.memory_space<vmem>>, vector<1x4x16xf32>,
    %94 = vector.extract_strided_slice %77 {offsets = [0, 72], sizes = [4, 16], strides = [1, 1]} : vector<4x288xf32> to vector<4x16xf32>
    %c0_99 = arith.constant 0 : index
    %c0_100 = arith.constant 0 : index
    %c64_101 = arith.constant 64 : index
    %95 = vector.load %arg5[%c0_99, %c0_100, %c64_101] : memref<1x4x256xf32, #tpu.memory_space<vmem>>, vector<1x4x16xf32>
    %96 = vector.shape_cast %95 : vector<1x4x16xf32> to vector<4x16xf32>
    %97 = vector.shape_cast %94 : vector<4x16xf32> to vector<1x4x16xf32>
    tpu.vector_store %arg5[%c0_99, %c0_100, %c64_101], %97 {strides = array<i32>} : memref<1x4x256xf32, #tpu.memory_space<vmem>>, vector<1x4x16xf32>,
    %98 = vector.extract_strided_slice %77 {offsets = [0, 90], sizes = [4, 16], strides = [1, 1]} : vector<4x288xf32> to vector<4x16xf32>
    %c0_102 = arith.constant 0 : index
    %c0_103 = arith.constant 0 : index
    %c80_104 = arith.constant 80 : index
    %99 = vector.load %arg5[%c0_102, %c0_103, %c80_104] : memref<1x4x256xf32, #tpu.memory_space<vmem>>, vector<1x4x16xf32>
    %100 = vector.shape_cast %99 : vector<1x4x16xf32> to vector<4x16xf32>
    %101 = vector.shape_cast %98 : vector<4x16xf32> to vector<1x4x16xf32>
    tpu.vector_store %arg5[%c0_102, %c0_103, %c80_104], %101 {strides = array<i32>} : memref<1x4x256xf32, #tpu.memory_space<vmem>>, vector<1x4x16xf32>,
    %102 = vector.extract_strided_slice %77 {offsets = [0, 108], sizes = [4, 16], strides = [1, 1]} : vector<4x288xf32> to vector<4x16xf32>
    %c0_105 = arith.constant 0 : index
    %c0_106 = arith.constant 0 : index
    %c96_107 = arith.constant 96 : index
    %103 = vector.load %arg5[%c0_105, %c0_106, %c96_107] : memref<1x4x256xf32, #tpu.memory_space<vmem>>, vector<1x4x16xf32>
    %104 = vector.shape_cast %103 : vector<1x4x16xf32> to vector<4x16xf32>
    %105 = vector.shape_cast %102 : vector<4x16xf32> to vector<1x4x16xf32>
    tpu.vector_store %arg5[%c0_105, %c0_106, %c96_107], %105 {strides = array<i32>} : memref<1x4x256xf32, #tpu.memory_space<vmem>>, vector<1x4x16xf32>,
    %106 = vector.extract_strided_slice %77 {offsets = [0, 126], sizes = [4, 16], strides = [1, 1]} : vector<4x288xf32> to vector<4x16xf32>
    %c0_108 = arith.constant 0 : index
    %c0_109 = arith.constant 0 : index
    %c112_110 = arith.constant 112 : index
    %107 = vector.load %arg5[%c0_108, %c0_109, %c112_110] : memref<1x4x256xf32, #tpu.memory_space<vmem>>, vector<1x4x16xf32>
    %108 = vector.shape_cast %107 : vector<1x4x16xf32> to vector<4x16xf32>
    %109 = vector.shape_cast %106 : vector<4x16xf32> to vector<1x4x16xf32>
    tpu.vector_store %arg5[%c0_108, %c0_109, %c112_110], %109 {strides = array<i32>} : memref<1x4x256xf32, #tpu.memory_space<vmem>>, vector<1x4x16xf32>,
    %110 = vector.extract_strided_slice %77 {offsets = [0, 144], sizes = [4, 16], strides = [1, 1]} : vector<4x288xf32> to vector<4x16xf32>
    %c0_111 = arith.constant 0 : index
    %c0_112 = arith.constant 0 : index
    %c128_113 = arith.constant 128 : index
    %111 = vector.load %arg5[%c0_111, %c0_112, %c128_113] : memref<1x4x256xf32, #tpu.memory_space<vmem>>, vector<1x4x16xf32>
    %112 = vector.shape_cast %111 : vector<1x4x16xf32> to vector<4x16xf32>
    %113 = vector.shape_cast %110 : vector<4x16xf32> to vector<1x4x16xf32>
    tpu.vector_store %arg5[%c0_111, %c0_112, %c128_113], %113 {strides = array<i32>} : memref<1x4x256xf32, #tpu.memory_space<vmem>>, vector<1x4x16xf32>,
    %114 = vector.extract_strided_slice %77 {offsets = [0, 162], sizes = [4, 16], strides = [1, 1]} : vector<4x288xf32> to vector<4x16xf32>
    %c0_114 = arith.constant 0 : index
    %c0_115 = arith.constant 0 : index
    %c144_116 = arith.constant 144 : index
    %115 = vector.load %arg5[%c0_114, %c0_115, %c144_116] : memref<1x4x256xf32, #tpu.memory_space<vmem>>, vector<1x4x16xf32>
    %116 = vector.shape_cast %115 : vector<1x4x16xf32> to vector<4x16xf32>
    %117 = vector.shape_cast %114 : vector<4x16xf32> to vector<1x4x16xf32>
    tpu.vector_store %arg5[%c0_114, %c0_115, %c144_116], %117 {strides = array<i32>} : memref<1x4x256xf32, #tpu.memory_space<vmem>>, vector<1x4x16xf32>,
    %118 = vector.extract_strided_slice %77 {offsets = [0, 180], sizes = [4, 16], strides = [1, 1]} : vector<4x288xf32> to vector<4x16xf32>
    %c0_117 = arith.constant 0 : index
    %c0_118 = arith.constant 0 : index
    %c160_119 = arith.constant 160 : index
    %119 = vector.load %arg5[%c0_117, %c0_118, %c160_119] : memref<1x4x256xf32, #tpu.memory_space<vmem>>, vector<1x4x16xf32>
    %120 = vector.shape_cast %119 : vector<1x4x16xf32> to vector<4x16xf32>
    %121 = vector.shape_cast %118 : vector<4x16xf32> to vector<1x4x16xf32>
    tpu.vector_store %arg5[%c0_117, %c0_118, %c160_119], %121 {strides = array<i32>} : memref<1x4x256xf32, #tpu.memory_space<vmem>>, vector<1x4x16xf32>,
    %122 = vector.extract_strided_slice %77 {offsets = [0, 198], sizes = [4, 16], strides = [1, 1]} : vector<4x288xf32> to vector<4x16xf32>
    %c0_120 = arith.constant 0 : index
    %c0_121 = arith.constant 0 : index
    %c176_122 = arith.constant 176 : index
    %123 = vector.load %arg5[%c0_120, %c0_121, %c176_122] : memref<1x4x256xf32, #tpu.memory_space<vmem>>, vector<1x4x16xf32>
    %124 = vector.shape_cast %123 : vector<1x4x16xf32> to vector<4x16xf32>
    %125 = vector.shape_cast %122 : vector<4x16xf32> to vector<1x4x16xf32>
    tpu.vector_store %arg5[%c0_120, %c0_121, %c176_122], %125 {strides = array<i32>} : memref<1x4x256xf32, #tpu.memory_space<vmem>>, vector<1x4x16xf32>,
    %126 = vector.extract_strided_slice %77 {offsets = [0, 216], sizes = [4, 16], strides = [1, 1]} : vector<4x288xf32> to vector<4x16xf32>
    %c0_123 = arith.constant 0 : index
    %c0_124 = arith.constant 0 : index
    %c192_125 = arith.constant 192 : index
    %127 = vector.load %arg5[%c0_123, %c0_124, %c192_125] : memref<1x4x256xf32, #tpu.memory_space<vmem>>, vector<1x4x16xf32>
    %128 = vector.shape_cast %127 : vector<1x4x16xf32> to vector<4x16xf32>
    %129 = vector.shape_cast %126 : vector<4x16xf32> to vector<1x4x16xf32>
    tpu.vector_store %arg5[%c0_123, %c0_124, %c192_125], %129 {strides = array<i32>} : memref<1x4x256xf32, #tpu.memory_space<vmem>>, vector<1x4x16xf32>,
    %130 = vector.extract_strided_slice %77 {offsets = [0, 234], sizes = [4, 16], strides = [1, 1]} : vector<4x288xf32> to vector<4x16xf32>
    %c0_126 = arith.constant 0 : index
    %c0_127 = arith.constant 0 : index
    %c208_128 = arith.constant 208 : index
    %131 = vector.load %arg5[%c0_126, %c0_127, %c208_128] : memref<1x4x256xf32, #tpu.memory_space<vmem>>, vector<1x4x16xf32>
    %132 = vector.shape_cast %131 : vector<1x4x16xf32> to vector<4x16xf32>
    %133 = vector.shape_cast %130 : vector<4x16xf32> to vector<1x4x16xf32>
    tpu.vector_store %arg5[%c0_126, %c0_127, %c208_128], %133 {strides = array<i32>} : memref<1x4x256xf32, #tpu.memory_space<vmem>>, vector<1x4x16xf32>,
    %134 = vector.extract_strided_slice %77 {offsets = [0, 252], sizes = [4, 16], strides = [1, 1]} : vector<4x288xf32> to vector<4x16xf32>
    %c0_129 = arith.constant 0 : index
    %c0_130 = arith.constant 0 : index
    %c224_131 = arith.constant 224 : index
    %135 = vector.load %arg5[%c0_129, %c0_130, %c224_131] : memref<1x4x256xf32, #tpu.memory_space<vmem>>, vector<1x4x16xf32>
    %136 = vector.shape_cast %135 : vector<1x4x16xf32> to vector<4x16xf32>
    %137 = vector.shape_cast %134 : vector<4x16xf32> to vector<1x4x16xf32>
    tpu.vector_store %arg5[%c0_129, %c0_130, %c224_131], %137 {strides = array<i32>} : memref<1x4x256xf32, #tpu.memory_space<vmem>>, vector<1x4x16xf32>,
    %138 = vector.extract_strided_slice %77 {offsets = [0, 270], sizes = [4, 16], strides = [1, 1]} : vector<4x288xf32> to vector<4x16xf32>
    %c0_132 = arith.constant 0 : index
    %c0_133 = arith.constant 0 : index
    %c240_134 = arith.constant 240 : index
    %139 = vector.load %arg5[%c0_132, %c0_133, %c240_134] : memref<1x4x256xf32, #tpu.memory_space<vmem>>, vector<1x4x16xf32>
    %140 = vector.shape_cast %139 : vector<1x4x16xf32> to vector<4x16xf32>
    %141 = vector.shape_cast %138 : vector<4x16xf32> to vector<1x4x16xf32>
    tpu.vector_store %arg5[%c0_132, %c0_133, %c240_134], %141 {strides = array<i32>} : memref<1x4x256xf32, #tpu.memory_space<vmem>>, vector<1x4x16xf32>,
    return
  }
  func.func @transform_0(%arg0: i32) -> (i32, i32, i32) {
    %c0_i32 = arith.constant 0 : i32
    %c0_i32_0 = arith.constant 0 : i32
    %c0_i32_1 = arith.constant 0 : i32
    return %arg0, %c0_i32, %c0_i32_0 : i32, i32, i32
  }
  func.func @transform_1(%arg0: i32) -> (i32, i32, i32) {
    %c0_i32 = arith.constant 0 : i32
    %c0_i32_0 = arith.constant 0 : i32
    %c0_i32_1 = arith.constant 0 : i32
    return %arg0, %c0_i32, %c0_i32_0 : i32, i32, i32
  }
  func.func @transform_2(%arg0: i32) -> (i32, i32) {
    %c0_i32 = arith.constant 0 : i32
    %c0_i32_0 = arith.constant 0 : i32
    %c0_i32_1 = arith.constant 0 : i32
    return %c0_i32, %c0_i32_0 : i32, i32
  }
  func.func @transform_3(%arg0: i32) -> (i32, i32) {
    %c0_i32 = arith.constant 0 : i32
    %c0_i32_0 = arith.constant 0 : i32
    %c0_i32_1 = arith.constant 0 : i32
    return %c0_i32, %c0_i32_0 : i32, i32
  }
  func.func @transform_4(%arg0: i32) -> (i32, i32, i32) {
    %c0_i32 = arith.constant 0 : i32
    %c0_i32_0 = arith.constant 0 : i32
    %c0_i32_1 = arith.constant 0 : i32
    return %arg0, %c0_i32, %c0_i32_0 : i32, i32, i32
  }
}

</mosaic_0001>

<llo_original>
// kernel: conv_resizeback_forward.1
$region0: #{conv_resizeback_forward.1}
  #allocation0 [shape = 'u32[]', space=smem, size = 0x4, offset = 0x4, fixed_abs, tag = 'smem constant byte address 0x4 - core index']
  #allocation1 [shape = 'u32[144,128]{1,0:T(1,128)}', space=vmem, size = 0x12000, scoped, tag = 'internal scratch']
  #allocation2 [shape = 'f32[8,384]{1,0:T(8,128)}', space=vmem, size = 0x3000, scoped, tag = 'scratch operand']
  #allocation3 [shape = 'f32[72,288]{1,0:T(8,128)}', space=vmem, size = 0x1b000, scoped, tag = 'scratch operand']
  %s0 = inlined_call_operand.vmem [shape: f32[2,4,324], index: 0, kind: input, shape index: {}]
  %s1 = inlined_call_operand.vmem [shape: f32[2,4,256], index: 1, kind: input, shape index: {}]
  %s2 = inlined_call_operand.vmem [shape: bf16[4,72], index: 2, kind: input, shape index: {}]
  %s3 = inlined_call_operand.vmem [shape: f32[4,1], index: 3, kind: input, shape index: {}]
  %s4 = inlined_call_operand.vmem [shape: f32[2,4,256], index: 4, kind: output, shape index: {}]
  %s5 = sld [smem:[#allocation0]]
  $region49: #{conv_resizeback_forward.1} parent=0
    _
  %s7 = ssub.s32 1, %s5
  %s8 = scalar_select 0, %s7, %s5
  loop: start=0, step=1, limit=4
  $region2: #{conv_resizeback_forward.1} parent=0 // loop_pre_header
    _
  $region3: #{conv_resizeback_forward.1} parent=0 // loop_header
    %s10 = sphi 0, %s14
    %p11 = scmp.ge.s32.totalorder %s10, 4
    %s20 = sphi 0, %s22
    %s23 = sphi 0, %s20
    %s24 = sphi 0, %s23
    %s40 = sphi 0, %s24
    %s46 = sphi 0, %s48
    %s49 = sphi 0, %s46
    %s50 = sphi 0, %s49
    %s66 = sphi 0, %s50
    %s70 = sphi 0, %s70
    %s72 = sphi 0, %s70
    %s73 = sphi 0, %s72
    %s87 = sphi 0, %s73
    %s91 = sphi 0, %s91
    %s93 = sphi 0, %s91
    %s94 = sphi 0, %s93
    %s108 = sphi 0, %s94
    %s114 = sphi 0, %s116
    %s117 = sphi 0, %s114
    %s118 = sphi 0, %s117
    %s134 = sphi 0, %s118
  $region4: #{conv_resizeback_forward.1} parent=0 // loop_header_branch
    %13 = sbr.rel (%p11) target = $region8
  $region5: #{conv_resizeback_forward.1} parent=0 // loop_body
    %s15 = ssub.s32 %s10, 1
    %s16 = ssub.s32 %s10, 2
    %s17 = sadd.s32 %s10, 1
    %s18 = ssub.s32 %s10, %s17
    %p19 = scmp.eq.s32.totalorder %s18, 0
    %s21 = sadd.s32 %s20, 1
    %s22 = scalar_select %p19, %s20, %s21
    %p25 = pneg %p19
    %p26 = scmp.eq.s32.totalorder %s10, 1
    %p27 = por %p25, %p26
    %p28 = scmp.ne.s32.totalorder %s20, %s23
    %p29 = scmp.eq.s32.totalorder %s10, 0
    %p30 = por %p28, %p29
    %p31 = scmp.ne.s32.totalorder %s20, %s23
    %p32 = scmp.eq.s32.totalorder %s15, 1
    %p33 = por %p31, %p32
    %p34 = scmp.ne.s32.totalorder %s23, %s24
    %p35 = scmp.eq.s32.totalorder %s15, 0
    %p36 = por %p34, %p35
    %p37 = scmp.ne.s32.totalorder %s23, %s24
    %p38 = scmp.eq.s32.totalorder %s16, 1
    %p39 = por %p37, %p38
    %p41 = scmp.ne.s32.totalorder %s24, %s40
    %p42 = scmp.eq.s32.totalorder %s16, 0
    %p43 = por %p41, %p42
    %s44 = ssub.s32 %s10, %s17
    %p45 = scmp.eq.s32.totalorder %s44, 0
    %s47 = sadd.s32 %s46, 1
    %s48 = scalar_select %p45, %s46, %s47
    %p51 = pneg %p45
    %p52 = scmp.eq.s32.totalorder %s10, 1
    %p53 = por %p51, %p52
    %p54 = scmp.ne.s32.totalorder %s46, %s49
    %p55 = scmp.eq.s32.totalorder %s10, 0
    %p56 = por %p54, %p55
    %p57 = scmp.ne.s32.totalorder %s46, %s49
    %p58 = scmp.eq.s32.totalorder %s15, 1
    %p59 = por %p57, %p58
    %p60 = scmp.ne.s32.totalorder %s49, %s50
    %p61 = scmp.eq.s32.totalorder %s15, 0
    %p62 = por %p60, %p61
    %p63 = scmp.ne.s32.totalorder %s49, %s50
    %p64 = scmp.eq.s32.totalorder %s16, 1
    %p65 = por %p63, %p64
    %p67 = scmp.ne.s32.totalorder %s50, %s66
    %p68 = scmp.eq.s32.totalorder %s16, 0
    %p69 = por %p67, %p68
    %s71 = sadd.s32 %s70, 1
    %p74 = scmp.eq.s32.totalorder %s10, 1
    %p75 = scmp.ne.s32.totalorder %s70, %s72
    %p76 = scmp.eq.s32.totalorder %s10, 0
    %p77 = por %p75, %p76
    %p78 = scmp.ne.s32.totalorder %s70, %s72
    %p79 = scmp.eq.s32.totalorder %s15, 1
    %p80 = por %p78, %p79
    %p81 = scmp.ne.s32.totalorder %s72, %s73
    %p82 = scmp.eq.s32.totalorder %s15, 0
    %p83 = por %p81, %p82
    %p84 = scmp.ne.s32.totalorder %s72, %s73
    %p85 = scmp.eq.s32.totalorder %s16, 1
    %p86 = por %p84, %p85
    %p88 = scmp.ne.s32.totalorder %s73, %s87
    %p89 = scmp.eq.s32.totalorder %s16, 0
    %p90 = por %p88, %p89
    %s92 = sadd.s32 %s91, 1
    %p95 = scmp.eq.s32.totalorder %s10, 1
    %p96 = scmp.ne.s32.totalorder %s91, %s93
    %p97 = scmp.eq.s32.totalorder %s10, 0
    %p98 = por %p96, %p97
    %p99 = scmp.ne.s32.totalorder %s91, %s93
    %p100 = scmp.eq.s32.totalorder %s15, 1
    %p101 = por %p99, %p100
    %p102 = scmp.ne.s32.totalorder %s93, %s94
    %p103 = scmp.eq.s32.totalorder %s15, 0
    %p104 = por %p102, %p103
    %p105 = scmp.ne.s32.totalorder %s93, %s94
    %p106 = scmp.eq.s32.totalorder %s16, 1
    %p107 = por %p105, %p106
    %p109 = scmp.ne.s32.totalorder %s94, %s108
    %p110 = scmp.eq.s32.totalorder %s16, 0
    %p111 = por %p109, %p110
    %s112 = ssub.s32 %s10, %s17
    %p113 = scmp.eq.s32.totalorder %s112, 0
    %s115 = sadd.s32 %s114, 1
    %s116 = scalar_select %p113, %s114, %s115
    %p119 = pneg %p113
    %p120 = scmp.eq.s32.totalorder %s10, 1
    %p121 = por %p119, %p120
    %p122 = scmp.ne.s32.totalorder %s114, %s117
    %p123 = scmp.eq.s32.totalorder %s10, 0
    %p124 = por %p122, %p123
    %p125 = scmp.ne.s32.totalorder %s114, %s117
    %p126 = scmp.eq.s32.totalorder %s15, 1
    %p127 = por %p125, %p126
    %p128 = scmp.ne.s32.totalorder %s117, %s118
    %p129 = scmp.eq.s32.totalorder %s15, 0
    %p130 = por %p128, %p129
    %p131 = scmp.ne.s32.totalorder %s117, %s118
    %p132 = scmp.eq.s32.totalorder %s16, 1
    %p133 = por %p131, %p132
    %p135 = scmp.ne.s32.totalorder %s118, %s134
    %p136 = scmp.eq.s32.totalorder %s16, 0
    %p137 = por %p135, %p136
    %p138 = scmp.le.s32.totalorder 1, %s10
    %p139 = scmp.lt.s32.totalorder %s10, 3
    %p140 = pnand %p138, %p139
    %p141 = pneg %p140
    // Predicated region
    $region9: #{conv_resizeback_forward.1} parent=5 // pred_check
      _
    $region10: #{conv_resizeback_forward.1} parent=5 // pred_check_branch
      %143 = sbr.rel (%p140) target = $region12
    $region11: #{conv_resizeback_forward.1} parent=5 // pred_region
      %s144 = ssub.s32 %s10, 1
      // Predicated region
      $region13: #{conv_resizeback_forward.1} parent=11 // pred_check
        %p145 = pneg %p83
      $region14: #{conv_resizeback_forward.1} parent=11 // pred_check_branch
        %147 = sbr.rel (%p145) target = $region16
      $region15: #{conv_resizeback_forward.1} parent=11 // pred_region
        _
      $region16: #{conv_resizeback_forward.1} parent=11 // pred_fallthru
        _
      // Predicated region
      $region17: #{conv_resizeback_forward.1} parent=11 // pred_check
        %p148 = pneg %p104
      $region18: #{conv_resizeback_forward.1} parent=11 // pred_check_branch
        %150 = sbr.rel (%p148) target = $region20
      $region19: #{conv_resizeback_forward.1} parent=11 // pred_region
        _
      $region20: #{conv_resizeback_forward.1} parent=11 // pred_fallthru
        _
    $region12: #{conv_resizeback_forward.1} parent=5 // pred_fallthru
      _
    %p151 = scmp.lt.s32.totalorder %s10, 2
    // Predicated region
    $region21: #{conv_resizeback_forward.1} parent=5 // pred_check
      %p152 = pneg %p151
    $region22: #{conv_resizeback_forward.1} parent=5 // pred_check_branch
      %154 = sbr.rel (%p152) target = $region24
    $region23: #{conv_resizeback_forward.1} parent=5 // pred_region
      // Predicated region
      $region25: #{conv_resizeback_forward.1} parent=23 // pred_check
        %p155 = pneg %p30
      $region26: #{conv_resizeback_forward.1} parent=23 // pred_check_branch
        %157 = sbr.rel (%p155) target = $region28
      $region27: #{conv_resizeback_forward.1} parent=23 // pred_region
        %p158 = scmp.lt.s32.totalorder %s10, 1
        %s159 = scalar_select %p158, %s10, 1
        %s160 = smul.addr %s159, 3
        %s161 = smul.addr %s160, 4
        %s162 = scalar_lea.vmem %s0, %s161
      $region28: #{conv_resizeback_forward.1} parent=23 // pred_fallthru
        _
      // Predicated region
      $region29: #{conv_resizeback_forward.1} parent=23 // pred_check
        %p163 = pneg %p56
      $region30: #{conv_resizeback_forward.1} parent=23 // pred_check_branch
        %165 = sbr.rel (%p163) target = $region32
      $region31: #{conv_resizeback_forward.1} parent=23 // pred_region
        %p166 = scmp.lt.s32.totalorder %s10, 1
        %s167 = scalar_select %p166, %s10, 1
        %s168 = smul.addr %s167, 2
        %s169 = smul.addr %s168, 4
        %s170 = scalar_lea.vmem %s1, %s169
      $region32: #{conv_resizeback_forward.1} parent=23 // pred_fallthru
        _
    $region24: #{conv_resizeback_forward.1} parent=5 // pred_fallthru
      _
    %p171 = scmp.le.s32.totalorder 1, %s10
    %p172 = scmp.lt.s32.totalorder %s10, 3
    %p173 = pnand %p171, %p172
    %p174 = pneg %p173
    // Predicated region
    $region33: #{conv_resizeback_forward.1} parent=5 // pred_check
      _
    $region34: #{conv_resizeback_forward.1} parent=5 // pred_check_branch
      %176 = sbr.rel (%p173) target = $region36
    $region35: #{conv_resizeback_forward.1} parent=5 // pred_region
      %s177 = ssub.s32 %s10, 1
      %p178 = scmp.lt.s32.totalorder %s15, 1
      %s179 = scalar_select %p178, %s15, 1
      %s180 = smul.addr %s179, 3
      %s181 = smul.addr %s180, 4
      %s182 = scalar_lea.vmem %s0, %s181
      %p183 = pneg %p36
      %p184 = pneg %p33
      %p185 = scmp.lt.s32.totalorder %s15, 1
      %s186 = scalar_select %p185, %s15, 1
      %s187 = smul.addr %s186, 2
      %s188 = smul.addr %s187, 4
      %s189 = scalar_lea.vmem %s1, %s188
      %p190 = pneg %p62
      %p191 = pneg %p59
      %p192 = pneg %p83
      %p193 = pneg %p80
      %p194 = pneg %p104
      %p195 = pneg %p101
      %p196 = pneg %p130
      %p197 = pneg %p127
      %p198 = scmp.lt.s32.totalorder %s15, 1
      %s199 = scalar_select %p198, %s15, 1
      %s200 = smul.addr %s199, 2
      %s201 = smul.addr %s200, 4
      %s202 = scalar_lea.vmem %s4, %s201
      %p203 = scmp.lt.s32.totalorder %s15, 1
      %s204 = scalar_select %p203, %s15, 1
      %s205 = smul.addr %s204, 3
      %s206 = smul.addr %s205, 4
      %s207 = scalar_lea.vmem %s0, %s206
      %p208 = scmp.lt.s32.totalorder %s15, 1
      %s209 = scalar_select %p208, %s15, 1
      %s210 = smul.addr %s209, 2
      %s211 = smul.addr %s210, 4
      %s212 = scalar_lea.vmem %s1, %s211
      %p213 = scmp.lt.s32.totalorder %s15, 1
      %s214 = scalar_select %p213, %s15, 1
      %s215 = smul.addr %s214, 2
      %s216 = smul.addr %s215, 4
      %s217 = scalar_lea.vmem %s4, %s216
      %v219 = vld [vmem:[%s3] sm:$0xf]
      %220 = vst [vmem:[#allocation2] sm:$0xff] 0.0
      %221 = vst [vmem:[#allocation2 + $0x8] sm:$0xff] 0.0
      %222 = vst [vmem:[#allocation2 + $0x10] sm:$0xff] 0.0
      %v223 = vld [vmem:[%s207] sm:$0xff]
      %v224 = vld [vmem:[%s207 + $0x8] sm:$0xf]
      %v226 = vcombine.high %v223, %v223
      %228 = vst [vmem:[#allocation2] sm:$0xf] %v223
      %229 = vst [vmem:[#allocation2 + $0x8] sm:$0xf] %v226
      %vm230 = vcmask 551936
      %231 = vst.msk [vmem:[#allocation2 + $0x10] sm:$0xf] %vm230, %v224
      %v232 = vld [vmem:[%s212] sm:$0xf]
      %v234 = vcombine.low %v232, %v232
      %235 = vrot.lane.b32.xlu0 %v234, 19
      %v236 = vpop.permute.xlu0 %235
      %vm238 = vcmask 285852
      %239 = vst.msk [vmem:[#allocation2] sm:$0xf0] %vm238, %v236
      %v240 = vld [vmem:[%s212] sm:$0xf]
      %v242 = vcombine.low %v240, %v240
      %243 = vrot.lane.b32.xlu0 %v242, 21
      %v244 = vpop.permute.xlu0 %243
      %vm246 = vcmask 433452
      %247 = vst.msk [vmem:[#allocation2] sm:$0xf0] %vm246, %v244
      %v248 = vld [vmem:[%s212] sm:$0xf]
      %v250 = vcombine.low %v248, %v248
      %251 = vrot.lane.b32.xlu0 %v250, 23
      %v252 = vpop.permute.xlu0 %251
      %vm254 = vcmask 581052
      %255 = vst.msk [vmem:[#allocation2] sm:$0xf0] %vm254, %v252
      %v256 = vld [vmem:[%s212] sm:$0xf]
      %v258 = vcombine.low %v256, %v256
      %259 = vrot.lane.b32.xlu0 %v258, 25
      %v260 = vpop.permute.xlu0 %259
      %vm262 = vcmask 728652
      %263 = vst.msk [vmem:[#allocation2] sm:$0xf0] %vm262, %v260
      %v264 = vld [vmem:[%s212] sm:$0xf]
      %v266 = vcombine.low %v264, %v264
      %267 = vrot.lane.b32.xlu0 %v266, 27
      %v268 = vpop.permute.xlu0 %267
      %vm270 = vcmask 876252
      %271 = vst.msk [vmem:[#allocation2] sm:$0xf0] %vm270, %v268
      %v272 = vld [vmem:[%s212] sm:$0xf]
      %v274 = vcombine.low %v272, %v272
      %275 = vrot.lane.b32.xlu0 %v274, 29
      %v276 = vpop.permute.xlu0 %275
      %vm278 = vcmask 1023852
      %279 = vst.msk [vmem:[#allocation2] sm:$0xf0] %vm278, %v276
      %v280 = vld [vmem:[%s212] sm:$0xf]
      %v282 = vcombine.low %v280, %v280
      %283 = vrot.lane.b32.xlu0 %v282, 31
      %v284 = vpop.permute.xlu0 %283
      %vm286 = vcmask 1048572
      %287 = vst.msk [vmem:[#allocation2] sm:$0xf0] %vm286, %v284
      %vm288 = vcmask 121860
      %289 = vst.msk [vmem:[#allocation2 + $0x8] sm:$0xf0] %vm288, %v284
      %v290 = vld [vmem:[%s212] sm:$0xf]
      %v292 = vcombine.low %v290, %v290
      %293 = vrot.lane.b32.xlu0 %v292, 33
      %v294 = vpop.permute.xlu0 %293
      %vm296 = vcmask 269452
      %297 = vst.msk [vmem:[#allocation2 + $0x8] sm:$0xf0] %vm296, %v294
      %v298 = vld [vmem:[%s212 + $0x4] sm:$0xf]
      %v300 = vcombine.low %v298, %v298
      %301 = vrot.lane.b32.xlu0 %v300, 35
      %v302 = vpop.permute.xlu0 %301
      %vm304 = vcmask 417052
      %305 = vst.msk [vmem:[#allocation2 + $0x8] sm:$0xf0] %vm304, %v302
      %v306 = vld [vmem:[%s212 + $0x4] sm:$0xf]
      %v308 = vcombine.low %v306, %v306
      %309 = vrot.lane.b32.xlu0 %v308, 37
      %v310 = vpop.permute.xlu0 %309
      %vm312 = vcmask 564652
      %313 = vst.msk [vmem:[#allocation2 + $0x8] sm:$0xf0] %vm312, %v310
      %v314 = vld [vmem:[%s212 + $0x4] sm:$0xf]
      %v316 = vcombine.low %v314, %v314
      %317 = vrot.lane.b32.xlu0 %v316, 39
      %v318 = vpop.permute.xlu0 %317
      %vm320 = vcmask 712252
      %321 = vst.msk [vmem:[#allocation2 + $0x8] sm:$0xf0] %vm320, %v318
      %v322 = vld [vmem:[%s212 + $0x4] sm:$0xf]
      %v324 = vcombine.low %v322, %v322
      %325 = vrot.lane.b32.xlu0 %v324, 41
      %v326 = vpop.permute.xlu0 %325
      %vm328 = vcmask 859852
      %329 = vst.msk [vmem:[#allocation2 + $0x8] sm:$0xf0] %vm328, %v326
      %v330 = vld [vmem:[%s212 + $0x4] sm:$0xf]
      %v332 = vcombine.low %v330, %v330
      %333 = vrot.lane.b32.xlu0 %v332, 43
      %v334 = vpop.permute.xlu0 %333
      %vm336 = vcmask 1007452
      %337 = vst.msk [vmem:[#allocation2 + $0x8] sm:$0xf0] %vm336, %v334
      %v338 = vld [vmem:[%s212 + $0x4] sm:$0xf]
      %v340 = vcombine.low %v338, %v338
      %341 = vrot.lane.b32.xlu0 %v340, 45
      %v342 = vpop.permute.xlu0 %341
      %vm344 = vcmask 1048556
      %345 = vst.msk [vmem:[#allocation2 + $0x8] sm:$0xf0] %vm344, %v342
      %vm346 = vcmask 105476
      %347 = vst.msk [vmem:[#allocation2 + $0x10] sm:$0xf0] %vm346, %v342
      %v348 = vld [vmem:[%s212 + $0x4] sm:$0xf]
      %v350 = vcombine.low %v348, %v348
      %351 = vrot.lane.b32.xlu0 %v350, 47
      %v352 = vpop.permute.xlu0 %351
      %vm354 = vcmask 253052
      %355 = vst.msk [vmem:[#allocation2 + $0x10] sm:$0xf0] %vm354, %v352
      %v356 = vld [vmem:[%s212 + $0x4] sm:$0xf]
      %v358 = vcombine.low %v356, %v356
      %359 = vrot.lane.b32.xlu0 %v358, 49
      %v360 = vpop.permute.xlu0 %359
      %vm362 = vcmask 400652
      %363 = vst.msk [vmem:[#allocation2 + $0x10] sm:$0xf0] %vm362, %v360
      %v364 = vld [vmem:[#allocation2] sm:$0xff]
      %v365 = vld [vmem:[#allocation2 + $0x8] sm:$0xff]
      %v366 = vld [vmem:[#allocation2 + $0x10] sm:$0xff]
      %367 = vst [vmem:[#allocation3] sm:$0xff] %v364
      %368 = vst [vmem:[#allocation3 + $0x8] sm:$0xff] %v365
      %vm369 = vcmask 261120
      %370 = vst.msk [vmem:[#allocation3 + $0x10] sm:$0xff] %vm369, %v366
      %v371 = vld [vmem:[#allocation2] sm:$0xff]
      %v372 = vld [vmem:[#allocation2 + $0x8] sm:$0xff]
      %v373 = vld [vmem:[#allocation2 + $0x10] sm:$0xff]
      %377 = vrot.lane.b32.xlu0 %v371, 127
      %v378 = vpop.permute.xlu0 %377
      %379 = vrot.lane.b32.xlu0 %v372, 127
      %v380 = vpop.permute.xlu0 %379
      %381 = vrot.lane.b32.xlu0 %v373, 127
      %v382 = vpop.permute.xlu0 %381
      %vm383 = vcmask 1039360
      %v384 = vsel %vm383, %v378, %v380
      %v385 = vsel %vm383, %v380, %v382
      %389 = vst [vmem:[#allocation3 + $0x18] sm:$0xff] %v384
      %390 = vst [vmem:[#allocation3 + $0x20] sm:$0xff] %v385
      %391 = vst.msk [vmem:[#allocation3 + $0x28] sm:$0xff] %vm369, %v382
      %v392 = vld [vmem:[#allocation2] sm:$0xff]
      %v393 = vld [vmem:[#allocation2 + $0x8] sm:$0xff]
      %v394 = vld [vmem:[#allocation2 + $0x10] sm:$0xff]
      %398 = vrot.lane.b32.xlu0 %v392, 126
      %v399 = vpop.permute.xlu0 %398
      %400 = vrot.lane.b32.xlu0 %v393, 126
      %v401 = vpop.permute.xlu0 %400
      %402 = vrot.lane.b32.xlu0 %v394, 126
      %v403 = vpop.permute.xlu0 %402
      %vm404 = vcmask 1031168
      %v405 = vsel %vm404, %v399, %v401
      %v406 = vsel %vm404, %v401, %v403
      %410 = vst [vmem:[#allocation3 + $0x30] sm:$0xff] %v405
      %411 = vst [vmem:[#allocation3 + $0x38] sm:$0xff] %v406
      %412 = vst.msk [vmem:[#allocation3 + $0x40] sm:$0xff] %vm369, %v403
      %v413 = vld [vmem:[#allocation2] sm:$0xff]
      %v414 = vld [vmem:[#allocation2 + $0x8] sm:$0xff]
      %v415 = vld [vmem:[#allocation2 + $0x10] sm:$0xff]
      %419 = vrot.lane.b32.xlu0 %v413, 110
      %v420 = vpop.permute.xlu0 %419
      %421 = vrot.lane.b32.xlu0 %v414, 110
      %v422 = vpop.permute.xlu0 %421
      %423 = vrot.lane.b32.xlu0 %v415, 110
      %v424 = vpop.permute.xlu0 %423
      %vm425 = vcmask 900096
      %v426 = vsel %vm425, %v420, %v422
      %v427 = vsel %vm425, %v422, %v424
      %431 = vst [vmem:[#allocation3 + $0x48] sm:$0xff] %v426
      %432 = vst [vmem:[#allocation3 + $0x50] sm:$0xff] %v427
      %433 = vst.msk [vmem:[#allocation3 + $0x58] sm:$0xff] %vm369, %v424
      %v434 = vld [vmem:[#allocation2] sm:$0xff]
      %v435 = vld [vmem:[#allocation2 + $0x8] sm:$0xff]
      %v436 = vld [vmem:[#allocation2 + $0x10] sm:$0xff]
      %440 = vrot.lane.b32.xlu0 %v434, 109
      %v441 = vpop.permute.xlu0 %440
      %442 = vrot.lane.b32.xlu0 %v435, 109
      %v443 = vpop.permute.xlu0 %442
      %444 = vrot.lane.b32.xlu0 %v436, 109
      %v445 = vpop.permute.xlu0 %444
      %vm446 = vcmask 891904
      %v447 = vsel %vm446, %v441, %v443
      %v448 = vsel %vm446, %v443, %v445
      %452 = vst [vmem:[#allocation3 + $0x60] sm:$0xff] %v447
      %453 = vst [vmem:[#allocation3 + $0x68] sm:$0xff] %v448
      %454 = vst.msk [vmem:[#allocation3 + $0x70] sm:$0xff] %vm369, %v445
      %v455 = vld [vmem:[#allocation2] sm:$0xff]
      %v456 = vld [vmem:[#allocation2 + $0x8] sm:$0xff]
      %v457 = vld [vmem:[#allocation2 + $0x10] sm:$0xff]
      %461 = vrot.lane.b32.xlu0 %v455, 108
      %v462 = vpop.permute.xlu0 %461
      %463 = vrot.lane.b32.xlu0 %v456, 108
      %v464 = vpop.permute.xlu0 %463
      %465 = vrot.lane.b32.xlu0 %v457, 108
      %v466 = vpop.permute.xlu0 %465
      %vm467 = vcmask 883712
      %v468 = vsel %vm467, %v462, %v464
      %v469 = vsel %vm467, %v464, %v466
      %473 = vst [vmem:[#allocation3 + $0x78] sm:$0xff] %v468
      %474 = vst [vmem:[#allocation3 + $0x80] sm:$0xff] %v469
      %475 = vst.msk [vmem:[#allocation3 + $0x88] sm:$0xff] %vm369, %v466
      %v476 = vld [vmem:[#allocation2] sm:$0xff]
      %v477 = vld [vmem:[#allocation2 + $0x8] sm:$0xff]
      %v478 = vld [vmem:[#allocation2 + $0x10] sm:$0xff]
      %482 = vrot.lane.b32.xlu0 %v476, 92
      %v483 = vpop.permute.xlu0 %482
      %484 = vrot.lane.b32.xlu0 %v477, 92
      %v485 = vpop.permute.xlu0 %484
      %486 = vrot.lane.b32.xlu0 %v478, 92
      %v487 = vpop.permute.xlu0 %486
      %vm488 = vcmask 752640
      %v489 = vsel %vm488, %v483, %v485
      %v490 = vsel %vm488, %v485, %v487
      %494 = vst [vmem:[#allocation3 + $0x90] sm:$0xff] %v489
      %495 = vst [vmem:[#allocation3 + $0x98] sm:$0xff] %v490
      %496 = vst.msk [vmem:[#allocation3 + $0xa0] sm:$0xff] %vm369, %v487
      %v497 = vld [vmem:[#allocation2] sm:$0xff]
      %v498 = vld [vmem:[#allocation2 + $0x8] sm:$0xff]
      %v499 = vld [vmem:[#allocation2 + $0x10] sm:$0xff]
      %503 = vrot.lane.b32.xlu0 %v497, 91
      %v504 = vpop.permute.xlu0 %503
      %505 = vrot.lane.b32.xlu0 %v498, 91
      %v506 = vpop.permute.xlu0 %505
      %507 = vrot.lane.b32.xlu0 %v499, 91
      %v508 = vpop.permute.xlu0 %507
      %vm509 = vcmask 744448
      %v510 = vsel %vm509, %v504, %v506
      %v511 = vsel %vm509, %v506, %v508
      %515 = vst [vmem:[#allocation3 + $0xa8] sm:$0xff] %v510
      %516 = vst [vmem:[#allocation3 + $0xb0] sm:$0xff] %v511
      %517 = vst.msk [vmem:[#allocation3 + $0xb8] sm:$0xff] %vm369, %v508
      %v518 = vld [vmem:[#allocation2] sm:$0xff]
      %v519 = vld [vmem:[#allocation2 + $0x8] sm:$0xff]
      %v520 = vld [vmem:[#allocation2 + $0x10] sm:$0xff]
      %524 = vrot.lane.b32.xlu0 %v518, 90
      %v525 = vpop.permute.xlu0 %524
      %526 = vrot.lane.b32.xlu0 %v519, 90
      %v527 = vpop.permute.xlu0 %526
      %528 = vrot.lane.b32.xlu0 %v520, 90
      %v529 = vpop.permute.xlu0 %528
      %vm530 = vcmask 736256
      %v531 = vsel %vm530, %v525, %v527
      %v532 = vsel %vm530, %v527, %v529
      %536 = vst [vmem:[#allocation3 + $0xc0] sm:$0xff] %v531
      %537 = vst [vmem:[#allocation3 + $0xc8] sm:$0xff] %v532
      %538 = vst.msk [vmem:[#allocation3 + $0xd0] sm:$0xff] %vm369, %v529
      %v539 = vld [vmem:[%s2] sm:$0x3]
      %v540 = vld [vmem:[#allocation3] sm:$0xff]
      %v541 = vld [vmem:[#allocation3 + $0x8] sm:$0xff]
      %v542 = vld [vmem:[#allocation3 + $0x10] sm:$0xff]
      %v543 = vld [vmem:[#allocation3 + $0x18] sm:$0xff]
      %v544 = vld [vmem:[#allocation3 + $0x20] sm:$0xff]
      %v545 = vld [vmem:[#allocation3 + $0x28] sm:$0xff]
      %v546 = vld [vmem:[#allocation3 + $0x30] sm:$0xff]
      %v547 = vld [vmem:[#allocation3 + $0x38] sm:$0xff]
      %v548 = vld [vmem:[#allocation3 + $0x40] sm:$0xff]
      %v549 = vld [vmem:[#allocation3 + $0x48] sm:$0xff]
      %v550 = vld [vmem:[#allocation3 + $0x50] sm:$0xff]
      %v551 = vld [vmem:[#allocation3 + $0x58] sm:$0xff]
      %v552 = vld [vmem:[#allocation3 + $0x60] sm:$0xff]
      %v553 = vld [vmem:[#allocation3 + $0x68] sm:$0xff]
      %v554 = vld [vmem:[#allocation3 + $0x70] sm:$0xff]
      %v555 = vld [vmem:[#allocation3 + $0x78] sm:$0xff]
      %v556 = vld [vmem:[#allocation3 + $0x80] sm:$0xff]
      %v557 = vld [vmem:[#allocation3 + $0x88] sm:$0xff]
      %v558 = vld [vmem:[#allocation3 + $0x90] sm:$0xff]
      %v559 = vld [vmem:[#allocation3 + $0x98] sm:$0xff]
      %v560 = vld [vmem:[#allocation3 + $0xa0] sm:$0xff]
      %v561 = vld [vmem:[#allocation3 + $0xa8] sm:$0xff]
      %v562 = vld [vmem:[#allocation3 + $0xb0] sm:$0xff]
      %v563 = vld [vmem:[#allocation3 + $0xb8] sm:$0xff]
      %v564 = vld [vmem:[#allocation3 + $0xc0] sm:$0xff]
      %v565 = vld [vmem:[#allocation3 + $0xc8] sm:$0xff]
      %v566 = vld [vmem:[#allocation3 + $0xd0] sm:$0xff]
      %v567 = vpack.c.bf16 %v543, %v540
      %v568 = vpack.c.bf16 %v544, %v541
      %v569 = vpack.c.bf16 %v545, %v542
      %v570 = vpack.c.bf16 %v549, %v546
      %v571 = vpack.c.bf16 %v550, %v547
      %v572 = vpack.c.bf16 %v551, %v548
      %v573 = vpack.c.bf16 %v555, %v552
      %v574 = vpack.c.bf16 %v556, %v553
      %v575 = vpack.c.bf16 %v557, %v554
      %v576 = vpack.c.bf16 %v561, %v558
      %v577 = vpack.c.bf16 %v562, %v559
      %v578 = vpack.c.bf16 %v563, %v560
      %v579 = vpack.c.bf16 %v564, %v564
      %v580 = vpack.c.bf16 %v565, %v565
      %v581 = vpack.c.bf16 %v566, %v566
      %583 = vset.pattern.permute.xlu0 0
      %584 = vperm.xlu0 %583, %v219
      %v585 = vpop.permute.xlu0 %584
      %vm587 = vcmask 588800
      %v589 = vsel %vm587, %v539, 0
      %vm591 = vcmask 1043456
      %v593 = vsel %vm591, %v579, 0
      %v596 = vsel %vm591, %v580, 0
      %v599 = vsel %vm591, %v581, 0
      %601 = vmatprep.subr.bf16.mxu0 0
      %602 = vmatpush1.bf16.msra.mxu0 0
      %603 = vmatprep.subr.bf16.mxu0 0
      %604 = vmatpush1.bf16.msra.mxu0 0
      %605 = vmatprep.subr.bf16.mxu0 0
      %606 = vmatpush1.bf16.msra.mxu0 0
      %607 = vmatprep.subr.bf16.mxu0 %v596
      %608 = vmatpush1.bf16.msra.mxu0 %v593
      %609 = vmatprep.subr.bf16.mxu0 %v577
      %610 = vmatpush1.bf16.msra.mxu0 %v576
      %611 = vmatprep.subr.bf16.mxu0 %v574
      %612 = vmatpush1.bf16.msra.mxu0 %v573
      %613 = vmatprep.subr.bf16.mxu0 %v571
      %614 = vmatpush1.bf16.msra.mxu0 %v570
      %615 = vmatprep.subr.bf16.mxu0 %v568
      %616 = vmatpush1.bf16.msra.mxu0 %v567
      %617 = vmatprep.subr.bf16.mxu0 0
      %618 = vmatpush2.bf16.msra.mxu0 0
      %619 = vmatprep.subr.bf16.mxu0 0
      %620 = vmatpush2.bf16.msra.mxu0 0
      %621 = vmatprep.subr.bf16.mxu0 0
      %622 = vmatpush2.bf16.msra.mxu0 0
      %623 = vmatprep.subr.bf16.mxu0 0
      %624 = vmatpush2.bf16.msra.mxu0 0
      %625 = vmatprep.subr.bf16.mxu0 0
      %626 = vmatpush2.bf16.msra.mxu0 0
      %627 = vmatprep.subr.bf16.mxu0 0
      %628 = vmatpush2.bf16.msra.mxu0 0
      %629 = vmatprep.subr.bf16.mxu0 0
      %630 = vmatpush2.bf16.msra.mxu0 0
      %631 = vmatprep.subr.bf16.mxu0 0
      %632 = vmatpush2.bf16.msra.mxu0 0
      %633 = vmatprep.mubr.bf16.mxu0 0
      %634 = vmatmul.mubr.bf16.gmra.mxu0 %v589
      %v635 = vpop.f32.mrf.mxu0
      %v636 = vadd.f32 %v585, %v635
      %v637 = vpop.f32.mrf.mxu0
      %v638 = vadd.f32 %v585, %v637
      %v639 = vpop.f32.mrf.mxu0
      %v640 = vpop.f32.mrf.mxu0
      %641 = vdwg.mxu0
      %642 = vmatprep.subr.bf16.mxu0 0
      %643 = vmatpush1.bf16.msra.mxu0 0
      %644 = vmatprep.subr.bf16.mxu0 0
      %645 = vmatpush1.bf16.msra.mxu0 0
      %646 = vmatprep.subr.bf16.mxu0 0
      %647 = vmatpush1.bf16.msra.mxu0 0
      %648 = vmatprep.subr.bf16.mxu0 0
      %649 = vmatpush1.bf16.msra.mxu0 %v599
      %650 = vmatprep.subr.bf16.mxu0 0
      %651 = vmatpush1.bf16.msra.mxu0 %v578
      %652 = vmatprep.subr.bf16.mxu0 0
      %653 = vmatpush1.bf16.msra.mxu0 %v575
      %654 = vmatprep.subr.bf16.mxu0 0
      %655 = vmatpush1.bf16.msra.mxu0 %v572
      %656 = vmatprep.subr.bf16.mxu0 0
      %657 = vmatpush1.bf16.msra.mxu0 %v569
      %658 = vmatprep.subr.bf16.mxu0 0
      %659 = vmatpush2.bf16.msra.mxu0 0
      %660 = vmatprep.subr.bf16.mxu0 0
      %661 = vmatpush2.bf16.msra.mxu0 0
      %662 = vmatprep.subr.bf16.mxu0 0
      %663 = vmatpush2.bf16.msra.mxu0 0
      %664 = vmatprep.subr.bf16.mxu0 0
      %665 = vmatpush2.bf16.msra.mxu0 0
      %666 = vmatprep.subr.bf16.mxu0 0
      %667 = vmatpush2.bf16.msra.mxu0 0
      %668 = vmatprep.subr.bf16.mxu0 0
      %669 = vmatpush2.bf16.msra.mxu0 0
      %670 = vmatprep.subr.bf16.mxu0 0
      %671 = vmatpush2.bf16.msra.mxu0 0
      %672 = vmatprep.subr.bf16.mxu0 0
      %673 = vmatpush2.bf16.msra.mxu0 0
      %674 = vmatprep.mubr.bf16.mxu0 0
      %675 = vmatmul.mubr.bf16.gmra.mxu0 %v589
      %v676 = vpop.f32.mrf.mxu0
      %v677 = vadd.f32 %v585, %v676
      %v678 = vpop.f32.mrf.mxu0
      %v679 = vpop.f32.mrf.mxu0
      %v680 = vpop.f32.mrf.mxu0
      %681 = vdwg.mxu0
      %vm682 = vcmask 125952
      %683 = vst.msk [vmem:[%s217] sm:$0xf] %vm682, %v636
      %685 = vrot.lane.b32.xlu0 %v636, 126
      %v686 = vpop.permute.xlu0 %685
      %vm688 = vcmask 257152
      %689 = vst.msk [vmem:[%s217] sm:$0xf] %vm688, %v686
      %690 = vrot.lane.b32.xlu0 %v636, 124
      %v691 = vpop.permute.xlu0 %690
      %vm693 = vcmask 388352
      %694 = vst.msk [vmem:[%s217] sm:$0xf] %vm693, %v691
      %695 = vrot.lane.b32.xlu0 %v636, 122
      %v696 = vpop.permute.xlu0 %695
      %vm698 = vcmask 519552
      %699 = vst.msk [vmem:[%s217] sm:$0xf] %vm698, %v696
      %700 = vrot.lane.b32.xlu0 %v636, 120
      %v701 = vpop.permute.xlu0 %700
      %vm703 = vcmask 650752
      %704 = vst.msk [vmem:[%s217] sm:$0xf] %vm703, %v701
      %705 = vrot.lane.b32.xlu0 %v636, 118
      %v706 = vpop.permute.xlu0 %705
      %vm708 = vcmask 781952
      %709 = vst.msk [vmem:[%s217] sm:$0xf] %vm708, %v706
      %710 = vrot.lane.b32.xlu0 %v636, 116
      %v711 = vpop.permute.xlu0 %710
      %vm713 = vcmask 913152
      %714 = vst.msk [vmem:[%s217] sm:$0xf] %vm713, %v711
      %v716 = vcombine.low %v636, %v638
      %717 = vrot.lane.b32.xlu0 %v716, 114
      %v718 = vpop.permute.xlu0 %717
      %v719 = vrot.slane %v718, 4
      %vm720 = vcmask 932864
      %v721 = vsel %vm720, %v718, %v719
      %vm723 = vcmask 1044352
      %724 = vst.msk [vmem:[%s217] sm:$0xf] %vm723, %v721
      %725 = vrot.lane.b32.xlu0 %v638, 112
      %v726 = vpop.permute.xlu0 %725
      %728 = vst.msk [vmem:[%s217 + $0x4] sm:$0xf] %vm682, %v726
      %729 = vrot.lane.b32.xlu0 %v638, 110
      %v730 = vpop.permute.xlu0 %729
      %732 = vst.msk [vmem:[%s217 + $0x4] sm:$0xf] %vm688, %v730
      %733 = vrot.lane.b32.xlu0 %v638, 108
      %v734 = vpop.permute.xlu0 %733
      %736 = vst.msk [vmem:[%s217 + $0x4] sm:$0xf] %vm693, %v734
      %737 = vrot.lane.b32.xlu0 %v638, 106
      %v738 = vpop.permute.xlu0 %737
      %740 = vst.msk [vmem:[%s217 + $0x4] sm:$0xf] %vm698, %v738
      %741 = vrot.lane.b32.xlu0 %v638, 104
      %v742 = vpop.permute.xlu0 %741
      %744 = vst.msk [vmem:[%s217 + $0x4] sm:$0xf] %vm703, %v742
      %745 = vrot.lane.b32.xlu0 %v638, 102
      %v746 = vpop.permute.xlu0 %745
      %748 = vst.msk [vmem:[%s217 + $0x4] sm:$0xf] %vm708, %v746
      %v750 = vcombine.low %v638, %v677
      %751 = vrot.lane.b32.xlu0 %v750, 100
      %v752 = vpop.permute.xlu0 %751
      %v753 = vrot.slane %v752, 4
      %vm754 = vcmask 818176
      %v755 = vsel %vm754, %v752, %v753
      %757 = vst.msk [vmem:[%s217 + $0x4] sm:$0xf] %vm713, %v755
      %758 = vrot.lane.b32.xlu0 %v677, 98
      %v759 = vpop.permute.xlu0 %758
      %761 = vst.msk [vmem:[%s217 + $0x4] sm:$0xf] %vm723, %v759
      %p762 = scmp.lt.s32.totalorder %s15, 1
      %s763 = scalar_select %p762, %s15, 1
      %s764 = smul.addr %s763, 2
      %s765 = smul.addr %s764, 4
      %s766 = scalar_lea.vmem %s4, %s765
      // Predicated region
      $region37: #{conv_resizeback_forward.1} parent=35 // pred_check
        %p767 = pneg %p127
      $region38: #{conv_resizeback_forward.1} parent=35 // pred_check_branch
        %769 = sbr.rel (%p767) target = $region40
      $region39: #{conv_resizeback_forward.1} parent=35 // pred_region
        _
      $region40: #{conv_resizeback_forward.1} parent=35 // pred_fallthru
        _
    $region36: #{conv_resizeback_forward.1} parent=5 // pred_fallthru
      _
    %p770 = scmp.le.s32.totalorder 2, %s10
    // Predicated region
    $region41: #{conv_resizeback_forward.1} parent=5 // pred_check
      %p771 = pneg %p770
    $region42: #{conv_resizeback_forward.1} parent=5 // pred_check_branch
      %773 = sbr.rel (%p771) target = $region44
    $region43: #{conv_resizeback_forward.1} parent=5 // pred_region
      %s774 = ssub.s32 %s10, 2
      // Predicated region
      $region45: #{conv_resizeback_forward.1} parent=43 // pred_check
        %p775 = pneg %p133
      $region46: #{conv_resizeback_forward.1} parent=43 // pred_check_branch
        %777 = sbr.rel (%p775) target = $region48
      $region47: #{conv_resizeback_forward.1} parent=43 // pred_region
        %p778 = scmp.lt.s32.totalorder %s16, 1
        %s779 = scalar_select %p778, %s16, 1
        %s780 = smul.addr %s779, 2
        %s781 = smul.addr %s780, 4
        %s782 = scalar_lea.vmem %s4, %s781
      $region48: #{conv_resizeback_forward.1} parent=43 // pred_fallthru
        _
    $region44: #{conv_resizeback_forward.1} parent=5 // pred_fallthru
      _
  $region6: #{conv_resizeback_forward.1} parent=0 // loop_footer
    %s14 = sadd.s32 1, %s10
  $region7: #{conv_resizeback_forward.1} parent=0 // loop_footer_branch
    %9 = sbr.rel target = $region3
  $region8: #{conv_resizeback_forward.1} parent=0 // loop_exit
    _

</llo_original>
